<compile_context>
chip_gen: v5e
topology: v5e:2x2
jax: 0.10.0
libtpu: 0.0.40
codegen_flags: <defaults>
</compile_context>

<pallas_src>
import functools

import jax
import jax.numpy as jnp
from jax.experimental import pallas as pl
from jax.experimental.pallas import tpu as pltpu


def _round_up(x: int, m: int) -> int:
    return (x + m - 1) // m * m


def _vmem_capacity_bytes() -> int:
    """Generation-aware VMEM capacity (falls back to the smallest, v7x's 64 MiB)."""
    try:
        return int(pltpu.get_tpu_info().vmem_capacity_bytes)
    except Exception:  # pragma: no cover - conservative fallback
        return 64 << 20


def embedder_kernel(ids_ref, fused_ref, out_ref):
    """One-hot gather fused with the (pre-folded) Linear: a single MXU matmul.

    ids_ref   : (TILE_N, 1)                 int32
    fused_ref : (vocab_pad, d_model_pad)    bf16/f32  (= table @ W.T + bias, padded)
    out_ref   : (TILE_N, d_model_pad)       out_dtype
    """
    ids = ids_ref[...]                                   # (TILE_N, 1)
    tn = ids.shape[0]
    vp = fused_ref.shape[0]

    # One-hot values {0,1} are exact in bf16, so onehot @ fused picks rows exactly
    # (f32 accumulation). Out-of-range ids give an all-zero one-hot row -> zero output.
    col = jax.lax.broadcasted_iota(jnp.int32, (tn, vp), 1)
    onehot = (col == ids).astype(fused_ref.dtype)         # (TILE_N, vocab_pad)

    out_ref[...] = jnp.dot(
        onehot, fused_ref[...], preferred_element_type=jnp.float32
    ).astype(out_ref.dtype)


def prepare_embedder_params(table, weight, bias, param_dtype=jnp.bfloat16):
    """Fuse table @ W.T + bias once (in f32) and pad to MXU/lane-friendly multiples.

    table : (vocab, feat), weight : (d_model, feat), bias : (d_model,)
    Returns (fused_padded (vocab_pad, d_model_pad) in `param_dtype`, vocab, d_model).
    One-time setup cost; hoist out of the token path for static weights.
    """
    vocab, _ = table.shape
    d_model = weight.shape[0]
    fused = (
        jnp.dot(
            table.astype(jnp.float32),
            weight.astype(jnp.float32).T,
            preferred_element_type=jnp.float32,
        )
        + bias.astype(jnp.float32)
    )
    vocab_pad = _round_up(vocab, 128)
    d_model_pad = _round_up(d_model, 128)
    fused = jnp.pad(fused, ((0, vocab_pad - vocab), (0, d_model_pad - d_model)))
    return fused.astype(param_dtype), vocab, d_model


def _choose_tile_n(requested, n_tokens, vocab_pad, d_model_pad,
                   fused_isize, out_isize, vmem_budget):
    """Pick the token tile: as large as requested, but VMEM-aware and >=2 grid steps."""
    t = _round_up(max(1, min(requested, n_tokens)), 8)
    # Prefer at least 2 grid steps when there is enough work so the "parallel" axis
    # actually shards across the two TensorCores on v7x (harmless elsewhere).
    if n_tokens > 8:
        t = min(t, max(8, _round_up(pl.cdiv(n_tokens, 2), 8)))

    def usage(tn):
        return (
            vocab_pad * d_model_pad * fused_isize        # resident table (single-buffered)
            + 2 * tn * 128 * 4                           # ids (tn,1) i32, lane-padded, dbl-buf
            + 2 * tn * d_model_pad * out_isize           # output tiles, double-buffered
            + tn * vocab_pad * fused_isize               # one-hot temp
            + tn * d_model_pad * 4                       # f32 matmul result before cast
        )

    while t > 8 and usage(t) > vmem_budget:
        t = max(8, _round_up(t // 2, 8))
    return t, usage(t)


@functools.partial(jax.jit, static_argnames=("d_model", "tile_n", "out_dtype"))
def embedder_apply(src, fused, d_model, tile_n=1024, out_dtype=jnp.float32):
    """src: (B, S) int; fused: (vocab_pad, d_model_pad) from prepare_embedder_params."""
    B, S = src.shape
    vocab_pad, d_model_pad = fused.shape
    N = B * S

    fused_isize = jnp.dtype(fused.dtype).itemsize
    out_isize = jnp.dtype(out_dtype).itemsize

    # Generation-aware VMEM budget (v7x: ~48 MiB; v5e/v6e: ~96 MiB). Never clamp below
    # the computed working set (tile_n is shrunk until it fits the budget).
    budget = int(0.75 * _vmem_capacity_bytes())
    tile_n, vmem_bytes = _choose_tile_n(
        tile_n, N, vocab_pad, d_model_pad, fused_isize, out_isize, budget
    )
    n_pad = _round_up(N, tile_n)

    ids = src.reshape(N).astype(jnp.int32)
    if n_pad != N:
        ids = jnp.pad(ids, (0, n_pad - N))      # pad tokens -> id 0 (sliced off below)
    ids = ids.reshape(n_pad, 1)

    grid = (n_pad // tile_n,)
    vmem_limit = min(max(2 * vmem_bytes, 8 << 20), budget)

    out = pl.pallas_call(
        embedder_kernel,
        out_shape=jax.ShapeDtypeStruct((n_pad, d_model_pad), out_dtype),
        grid_spec=pltpu.PrefetchScalarGridSpec(
            num_scalar_prefetch=0,
            grid=grid,
            in_specs=[
                pl.BlockSpec((tile_n, 1), lambda i: (i, 0)),
                # Resident fused table: constant index_map, single-buffered (no point
                # double-buffering a block that never changes).
                pl.BlockSpec(
                    (vocab_pad, d_model_pad),
                    lambda i: (0, 0),
                    pipeline_mode=pl.Buffered(1),
                ),
            ],
            out_specs=pl.BlockSpec((tile_n, d_model_pad), lambda i: (i, 0)),
        ),
        compiler_params=pltpu.CompilerParams(
            dimension_semantics=("parallel",),
            vmem_limit_bytes=vmem_limit,
        ),
        cost_estimate=pl.CostEstimate(
            flops=2 * n_pad * vocab_pad * d_model_pad,
            transcendentals=0,
            bytes_accessed=(
                n_pad * 4
                + n_pad * d_model_pad * out_isize
                + vocab_pad * d_model_pad * fused_isize
            ),
        ),
    )(ids, fused)

    # Slice padding off only if padding was actually added (when d_model % 128 == 0 and
    # N % tile_n == 0 this is a pure reshape -> no extra HBM round-trip).
    if n_pad != N or d_model_pad != d_model:
        out = out[:N, :d_model]
    return out.reshape(B, S, d_model)


def embedder_forward(src, table, weight, bias, *, tile_n=1024,
                     param_dtype=jnp.bfloat16, out_dtype=jnp.float32):
    """Convenience one-shot wrapper (param prep + apply)."""
    fused, _, d_model = prepare_embedder_params(table, weight, bias, param_dtype)
    return embedder_apply(src, fused, d_model, tile_n, out_dtype)


def reference_forward(src, table, weight, bias):
    emb = jnp.take(table, src, axis=0)                      # (B, S, feat)
    return jnp.einsum("bsf,df->bsd", emb, weight) + bias    # (B, S, d_model)


if __name__ == "__main__":
    # Small synthetic shapes (no mat2vec.csv available; synthesize the table).
    # TODO(synk): production would load the mat2vec.csv rows instead of random data.
    B, S = 2, 8
    n_elements = 16          # rows of the synthetic "cbfv" csv
    feat_size = 32           # mat2vec feature width
    d_model = 32
    vocab = n_elements + 1   # + zero/pad row at index 0

    key = jax.random.PRNGKey(0)
    k_cbfv, k_w, k_b, k_src = jax.random.split(key, 4)

    # cbfv table: zeros row prepended, as in the module's __init__.
    cbfv = jax.random.normal(k_cbfv, (n_elements, feat_size), dtype=jnp.float32)
    table = jnp.concatenate([jnp.zeros((1, feat_size), jnp.float32), cbfv], axis=0)

    # nn.Linear(feat_size, d_model) parameters (deterministic init).
    weight = jax.random.normal(k_w, (d_model, feat_size), dtype=jnp.float32) * 0.05
    bias = jax.random.normal(k_b, (d_model,), dtype=jnp.float32) * 0.05

    # Integer element indices (0 = padding row).
    src = jax.random.randint(k_src, (B, S), minval=0, maxval=vocab, dtype=jnp.int32)

    # Hoisted parameter prep (done once for static weights), then the kernel call.
    fused, vocab_rows, dm = prepare_embedder_params(table, weight, bias)  # bf16 fused
    out = embedder_apply(src, fused, dm)
    jax.block_until_ready(out)
    assert out.shape == (B, S, d_model)

    # Check 1 (tight): the kernel must reproduce the bf16-rounded fused-row gather exactly
    # (one-hot selection with f32 accumulation introduces no extra error).
    fused_rows = fused[:vocab_rows, :dm].astype(jnp.float32)
    ref_exact = jnp.take(fused_rows, src.reshape(-1), axis=0).reshape(B, S, dm)
    assert jnp.allclose(out, ref_exact, atol=1e-6, rtol=1e-6)

    # Check 2 (semantics vs the f32 PyTorch-equivalent forward; bf16 table rounding only).
    ref_f32 = reference_forward(src, table, weight, bias)
    assert jnp.allclose(out, ref_f32, atol=2e-2, rtol=2e-2)

    print("KERNEL_OK")
</pallas_src>

<mosaic_0001>
module attributes {stable_mosaic.version = 11 : i64} {
  func.func @embedder_kernel(%arg0: i32, %arg1: memref<8x1xi32, #tpu.memory_space<vmem>>, %arg2: memref<128x128xbf16, #tpu.memory_space<vmem>>, %arg3: memref<8x128xf32, #tpu.memory_space<vmem>>) attributes {dimension_semantics = [#tpu.dimension_semantics<parallel>], iteration_bounds = array<i64: 2>, scalar_prefetch = 0 : i64, scratch_operands = 0 : i64, tpu.core_type = #tpu.core_type<tc>, window_params = [{transform_indices = @transform_0, window_bounds = array<i64: 8, 1>}, {pipeline_mode = #tpu.pipeline_mode<synchronous>, transform_indices = @transform_1, window_bounds = array<i64: 128, 128>}, {transform_indices = @transform_2, window_bounds = array<i64: 8, 128>}]} {
    %c0 = arith.constant 0 : index
    %c0_0 = arith.constant 0 : index
    %0 = vector.load %arg1[%c0, %c0_0] : memref<8x1xi32, #tpu.memory_space<vmem>>, vector<8x1xi32>
    %1 = tpu.iota {dimensions = array<i32: 1>} : vector<8x128xi32>
    %2 = vector.broadcast %0 : vector<8x1xi32> to vector<8x128xi32>
    %3 = arith.cmpi eq, %1, %2 : vector<8x128xi32>
    %4 = arith.extui %3 : vector<8x128xi1> to vector<8x128xi32>
    %5 = arith.sitofp %4 : vector<8x128xi32> to vector<8x128xf32>
    %6 = arith.truncf %5 : vector<8x128xf32> to vector<8x128xbf16>
    %c0_1 = arith.constant 0 : index
    %c0_2 = arith.constant 0 : index
    %7 = vector.load %arg2[%c0_1, %c0_2] : memref<128x128xbf16, #tpu.memory_space<vmem>>, vector<128x128xbf16>
    %cst = arith.constant dense<0.000000e+00> : vector<8x128xf32>
    %8 = tpu.matmul %6, %7, %cst {dimension_numbers = #tpu.dot_dimension_numbers<[1], [0], [0], [1], [0, 0, 1, 1], [], []>} : vector<8x128xbf16>, vector<128x128xbf16>, vector<8x128xf32> -> vector<8x128xf32>
    %c0_3 = arith.constant 0 : index
    %c0_4 = arith.constant 0 : index
    %9 = vector.load %arg3[%c0_3, %c0_4] : memref<8x128xf32, #tpu.memory_space<vmem>>, vector<8x128xf32>
    tpu.vector_store %arg3[%c0_3, %c0_4], %8 {strides = array<i32>} : memref<8x128xf32, #tpu.memory_space<vmem>>, vector<8x128xf32>,
    return
  }
  func.func @transform_0(%arg0: i32) -> (i32, i32) {
    %c0_i32 = arith.constant 0 : i32
    %c0_i32_0 = arith.constant 0 : i32
    return %arg0, %c0_i32 : i32, i32
  }
  func.func @transform_1(%arg0: i32) -> (i32, i32) {
    %c0_i32 = arith.constant 0 : i32
    %c0_i32_0 = arith.constant 0 : i32
    %c0_i32_1 = arith.constant 0 : i32
    return %c0_i32, %c0_i32_0 : i32, i32
  }
  func.func @transform_2(%arg0: i32) -> (i32, i32) {
    %c0_i32 = arith.constant 0 : i32
    %c0_i32_0 = arith.constant 0 : i32
    return %arg0, %c0_i32 : i32, i32
  }
}

</mosaic_0001>

<llo_original>
// kernel: embedder_apply.1
$region0: #{embedder_apply.1}
  #allocation0 [shape = 'u32[]', space=smem, size = 0x4, offset = 0x4, fixed_abs, tag = 'smem constant byte address 0x4 - core index']
  #allocation1 [shape = 'u32[72,128]{1,0:T(1,128)}', space=vmem, size = 0x9000, scoped, tag = 'internal scratch']
  %s0 = inlined_call_operand.vmem [shape: s32[16,1], index: 0, kind: input, shape index: {}]
  %s1 = inlined_call_operand.hbm [shape: bf16[128,128], index: 1, kind: input, shape index: {}]
  %s2 = inlined_call_operand.vmem [shape: f32[16,128], index: 2, kind: output, shape index: {}]
  %s3 = sld [smem:[#allocation0]]
  $region45: #{embedder_apply.1} parent=0
    _
  %s5 = ssub.s32 1, %s3
  %s6 = scalar_select 0, %s5, %s3
  $region1: #{embedder_apply.1} parent=0
    #allocation2 [shape = 'u8[32768]{0}', space=vmem, size = 0x8000, scoped, tag = 'input window, operand 1, single buffered']
    #allocation3 [shape = 's32[2]{0}', space=sflag, size = 0x8, scoped, tag = 'scoped memory for embedder_apply.1']
    %7 = vsyncpa [#allocation3], 0
    loop: start=0, step=1, limit=4
    $region2: #{embedder_apply.1} parent=1 // loop_pre_header
      _
    $region3: #{embedder_apply.1} parent=1 // loop_header
      %s9 = sphi 0, %s13
      %p10 = scmp.ge.s32.totalorder %s9, 4
      %s19 = sphi 0, %s21
      %s22 = sphi 0, %s19
      %s23 = sphi 0, %s22
      %s39 = sphi 0, %s23
      %s43 = sphi 0, %s43
      %s45 = sphi 0, %s43
      %s46 = sphi 0, %s45
      %s60 = sphi 0, %s46
      %s66 = sphi 0, %s68
      %s69 = sphi 0, %s66
      %s70 = sphi 0, %s69
      %s86 = sphi 0, %s70
    $region4: #{embedder_apply.1} parent=1 // loop_header_branch
      %12 = sbr.rel (%p10) target = $region8
    $region5: #{embedder_apply.1} parent=1 // loop_body
      %s14 = ssub.s32 %s9, 1
      %s15 = ssub.s32 %s9, 2
      %s16 = sadd.s32 %s9, 1
      %s17 = ssub.s32 %s9, %s16
      %p18 = scmp.eq.s32.totalorder %s17, 0
      %s20 = sadd.s32 %s19, 1
      %s21 = scalar_select %p18, %s19, %s20
      %p24 = pneg %p18
      %p25 = scmp.eq.s32.totalorder %s9, 1
      %p26 = por %p24, %p25
      %p27 = scmp.ne.s32.totalorder %s19, %s22
      %p28 = scmp.eq.s32.totalorder %s9, 0
      %p29 = por %p27, %p28
      %p30 = scmp.ne.s32.totalorder %s19, %s22
      %p31 = scmp.eq.s32.totalorder %s14, 1
      %p32 = por %p30, %p31
      %p33 = scmp.ne.s32.totalorder %s22, %s23
      %p34 = scmp.eq.s32.totalorder %s14, 0
      %p35 = por %p33, %p34
      %p36 = scmp.ne.s32.totalorder %s22, %s23
      %p37 = scmp.eq.s32.totalorder %s15, 1
      %p38 = por %p36, %p37
      %p40 = scmp.ne.s32.totalorder %s23, %s39
      %p41 = scmp.eq.s32.totalorder %s15, 0
      %p42 = por %p40, %p41
      %s44 = sadd.s32 %s43, 1
      %p47 = scmp.eq.s32.totalorder %s9, 1
      %p48 = scmp.ne.s32.totalorder %s43, %s45
      %p49 = scmp.eq.s32.totalorder %s9, 0
      %p50 = por %p48, %p49
      %p51 = scmp.ne.s32.totalorder %s43, %s45
      %p52 = scmp.eq.s32.totalorder %s14, 1
      %p53 = por %p51, %p52
      %p54 = scmp.ne.s32.totalorder %s45, %s46
      %p55 = scmp.eq.s32.totalorder %s14, 0
      %p56 = por %p54, %p55
      %p57 = scmp.ne.s32.totalorder %s45, %s46
      %p58 = scmp.eq.s32.totalorder %s15, 1
      %p59 = por %p57, %p58
      %p61 = scmp.ne.s32.totalorder %s46, %s60
      %p62 = scmp.eq.s32.totalorder %s15, 0
      %p63 = por %p61, %p62
      %s64 = ssub.s32 %s9, %s16
      %p65 = scmp.eq.s32.totalorder %s64, 0
      %s67 = sadd.s32 %s66, 1
      %s68 = scalar_select %p65, %s66, %s67
      %p71 = pneg %p65
      %p72 = scmp.eq.s32.totalorder %s9, 1
      %p73 = por %p71, %p72
      %p74 = scmp.ne.s32.totalorder %s66, %s69
      %p75 = scmp.eq.s32.totalorder %s9, 0
      %p76 = por %p74, %p75
      %p77 = scmp.ne.s32.totalorder %s66, %s69
      %p78 = scmp.eq.s32.totalorder %s14, 1
      %p79 = por %p77, %p78
      %p80 = scmp.ne.s32.totalorder %s69, %s70
      %p81 = scmp.eq.s32.totalorder %s14, 0
      %p82 = por %p80, %p81
      %p83 = scmp.ne.s32.totalorder %s69, %s70
      %p84 = scmp.eq.s32.totalorder %s15, 1
      %p85 = por %p83, %p84
      %p87 = scmp.ne.s32.totalorder %s70, %s86
      %p88 = scmp.eq.s32.totalorder %s15, 0
      %p89 = por %p87, %p88
      %p90 = scmp.le.s32.totalorder 1, %s9
      %p91 = scmp.lt.s32.totalorder %s9, 3
      %p92 = pnand %p90, %p91
      %p93 = pneg %p92
      // Predicated region
      $region9: #{embedder_apply.1} parent=5 // pred_check
        _
      $region10: #{embedder_apply.1} parent=5 // pred_check_branch
        %95 = sbr.rel (%p92) target = $region12
      $region11: #{embedder_apply.1} parent=5 // pred_region
        %s96 = ssub.s32 %s9, 1
        // Predicated region
        $region13: #{embedder_apply.1} parent=11 // pred_check
          %p97 = pneg %p56
        $region14: #{embedder_apply.1} parent=11 // pred_check_branch
          %99 = sbr.rel (%p97) target = $region16
        $region15: #{embedder_apply.1} parent=11 // pred_region
          %101 = vsyncadd [#allocation3], 0
          %s102 = sshll.u32 %s1, 4
          %s103 = int_to_ptr.hbm [resolvable:$true] %s102
          %s104 = sshll.u32 [#allocation2], 4
          %s105 = int_to_ptr.vmem [resolvable:$true] %s104
          %110 = dma.hbm_to_vmem [thread:$0]  %s103, 1024, %s105, [#allocation3], 64, 64, 4
        $region16: #{embedder_apply.1} parent=11 // pred_fallthru
          _
      $region12: #{embedder_apply.1} parent=5 // pred_fallthru
        _
      %p111 = scmp.lt.s32.totalorder %s9, 2
      // Predicated region
      $region17: #{embedder_apply.1} parent=5 // pred_check
        %p112 = pneg %p111
      $region18: #{embedder_apply.1} parent=5 // pred_check_branch
        %114 = sbr.rel (%p112) target = $region20
      $region19: #{embedder_apply.1} parent=5 // pred_region
        // Predicated region
        $region21: #{embedder_apply.1} parent=19 // pred_check
          %p115 = pneg %p29
        $region22: #{embedder_apply.1} parent=19 // pred_check_branch
          %117 = sbr.rel (%p115) target = $region24
        $region23: #{embedder_apply.1} parent=19 // pred_region
          %p118 = scmp.lt.s32.totalorder %s9, 1
          %s119 = scalar_select %p118, %s9, 1
          %s120 = smul.addr %s119, 8
          %s121 = scalar_lea.vmem %s0, %s120
        $region24: #{embedder_apply.1} parent=19 // pred_fallthru
          _
      $region20: #{embedder_apply.1} parent=5 // pred_fallthru
        _
      %p122 = scmp.le.s32.totalorder 1, %s9
      %p123 = scmp.lt.s32.totalorder %s9, 3
      %p124 = pnand %p122, %p123
      %p125 = pneg %p124
      // Predicated region
      $region25: #{embedder_apply.1} parent=5 // pred_check
        _
      $region26: #{embedder_apply.1} parent=5 // pred_check_branch
        %127 = sbr.rel (%p124) target = $region28
      $region27: #{embedder_apply.1} parent=5 // pred_region
        %s128 = ssub.s32 %s9, 1
        // Predicated region
        $region29: #{embedder_apply.1} parent=27 // pred_check
          %p129 = pneg %p56
        $region30: #{embedder_apply.1} parent=27 // pred_check_branch
          %131 = sbr.rel (%p129) target = $region32
        $region31: #{embedder_apply.1} parent=27 // pred_region
          %133 = dma.done [#allocation3], 1024
        $region32: #{embedder_apply.1} parent=27 // pred_fallthru
          _
        %p134 = scmp.lt.s32.totalorder %s14, 1
        %s135 = scalar_select %p134, %s14, 1
        %s136 = smul.addr %s135, 8
        %s137 = scalar_lea.vmem %s0, %s136
        %p138 = pneg %p35
        %p139 = pneg %p32
        %p140 = pneg %p56
        %p141 = pneg %p53
        %p142 = pneg %p82
        %p143 = pneg %p79
        %p144 = scmp.lt.s32.totalorder %s14, 1
        %s145 = scalar_select %p144, %s14, 1
        %s146 = smul.addr %s145, 8
        %s147 = scalar_lea.vmem %s2, %s146
        %p148 = scmp.lt.s32.totalorder %s14, 1
        %s149 = scalar_select %p148, %s14, 1
        %s150 = smul.addr %s149, 8
        %s151 = scalar_lea.vmem %s0, %s150
        %p152 = scmp.lt.s32.totalorder %s14, 1
        %s153 = scalar_select %p152, %s14, 1
        %s154 = smul.addr %s153, 8
        %s155 = scalar_lea.vmem %s2, %s154
        %v156 = vld [vmem:[%s151] sm:$0xff]
        %v157 = vlaneseq
        %v158 = vand.u32 %v157, 127
        %159 = vset.pattern.permute.xlu0 0
        %160 = vperm.xlu0 %159, %v156
        %v161 = vpop.permute.xlu0 %160
        %vm162 = vcmp.eq.s32.totalorder %v158, %v161
        %v163 = vsel %vm162, 1, 0
        %v164 = vcvt.s32.f32 %v163
        %v165 = vpack.c.bf16 %v164, %v164
        %v166 = vld [vmem:[#allocation2] sm:$0xf]
        %v167 = vld [vmem:[#allocation2 + $0x4] sm:$0xf]
        %v168 = vld [vmem:[#allocation2 + $0x8] sm:$0xf]
        %v169 = vld [vmem:[#allocation2 + $0xc] sm:$0xf]
        %v170 = vld [vmem:[#allocation2 + $0x10] sm:$0xf]
        %v171 = vld [vmem:[#allocation2 + $0x14] sm:$0xf]
        %v172 = vld [vmem:[#allocation2 + $0x18] sm:$0xf]
        %v173 = vld [vmem:[#allocation2 + $0x1c] sm:$0xf]
        %v174 = vld [vmem:[#allocation2 + $0x20] sm:$0xf]
        %v175 = vld [vmem:[#allocation2 + $0x24] sm:$0xf]
        %v176 = vld [vmem:[#allocation2 + $0x28] sm:$0xf]
        %v177 = vld [vmem:[#allocation2 + $0x2c] sm:$0xf]
        %v178 = vld [vmem:[#allocation2 + $0x30] sm:$0xf]
        %v179 = vld [vmem:[#allocation2 + $0x34] sm:$0xf]
        %v180 = vld [vmem:[#allocation2 + $0x38] sm:$0xf]
        %v181 = vld [vmem:[#allocation2 + $0x3c] sm:$0xf]
        %v198 = vunpack.c.l.b16 %v166
        %v199 = vunpack.c.l.b16 %v167
        %v200 = vunpack.c.l.b16 %v168
        %v201 = vunpack.c.l.b16 %v169
        %v202 = vunpack.c.l.b16 %v170
        %v203 = vunpack.c.l.b16 %v171
        %v204 = vunpack.c.l.b16 %v172
        %v205 = vunpack.c.l.b16 %v173
        %v206 = vunpack.c.l.b16 %v174
        %v207 = vunpack.c.l.b16 %v175
        %v208 = vunpack.c.l.b16 %v176
        %v209 = vunpack.c.l.b16 %v177
        %v210 = vunpack.c.l.b16 %v178
        %v211 = vunpack.c.l.b16 %v179
        %v212 = vunpack.c.l.b16 %v180
        %v213 = vunpack.c.l.b16 %v181
        %v214 = vpack.c.b16 %v199, %v198
        %v215 = vpack.c.b16 %v201, %v200
        %v216 = vpack.c.b16 %v203, %v202
        %v217 = vpack.c.b16 %v205, %v204
        %v218 = vpack.c.b16 %v207, %v206
        %v219 = vpack.c.b16 %v209, %v208
        %v220 = vpack.c.b16 %v211, %v210
        %v221 = vpack.c.b16 %v213, %v212
        %230 = vmatpush.bf16.msra.mxu0 %v221
        %231 = vmatpush.bf16.msra.mxu0 %v220
        %232 = vmatpush.bf16.msra.mxu0 %v219
        %233 = vmatpush.bf16.msra.mxu0 %v218
        %234 = vmatpush.bf16.msra.mxu0 %v217
        %235 = vmatpush.bf16.msra.mxu0 %v216
        %236 = vmatpush.bf16.msra.mxu0 %v215
        %237 = vmatpush.bf16.msra.mxu0 %v214
        %238 = vmatmul.bf16.gmra.mxu0 %v165
        %v239 = vpop.f32.mrf.mxu0
        %v240 = vadd.f32 0.0, %v239
        %v241 = vpop.f32.mrf.mxu0
        %242 = vdwg.mxu0
        %243 = vst [vmem:[%s155] sm:$0xff] %v240
        %p244 = scmp.lt.s32.totalorder %s14, 1
        %s245 = scalar_select %p244, %s14, 1
        %s246 = smul.addr %s245, 8
        %s247 = scalar_lea.vmem %s2, %s246
        // Predicated region
        $region33: #{embedder_apply.1} parent=27 // pred_check
          %p248 = pneg %p79
        $region34: #{embedder_apply.1} parent=27 // pred_check_branch
          %250 = sbr.rel (%p248) target = $region36
        $region35: #{embedder_apply.1} parent=27 // pred_region
          _
        $region36: #{embedder_apply.1} parent=27 // pred_fallthru
          _
      $region28: #{embedder_apply.1} parent=5 // pred_fallthru
        _
      %p251 = scmp.le.s32.totalorder 2, %s9
      // Predicated region
      $region37: #{embedder_apply.1} parent=5 // pred_check
        %p252 = pneg %p251
      $region38: #{embedder_apply.1} parent=5 // pred_check_branch
        %254 = sbr.rel (%p252) target = $region40
      $region39: #{embedder_apply.1} parent=5 // pred_region
        %s255 = ssub.s32 %s9, 2
        // Predicated region
        $region41: #{embedder_apply.1} parent=39 // pred_check
          %p256 = pneg %p85
        $region42: #{embedder_apply.1} parent=39 // pred_check_branch
          %258 = sbr.rel (%p256) target = $region44
        $region43: #{embedder_apply.1} parent=39 // pred_region
          %p259 = scmp.lt.s32.totalorder %s15, 1
          %s260 = scalar_select %p259, %s15, 1
          %s261 = smul.addr %s260, 8
          %s262 = scalar_lea.vmem %s2, %s261
        $region44: #{embedder_apply.1} parent=39 // pred_fallthru
          _
      $region40: #{embedder_apply.1} parent=5 // pred_fallthru
        _
    $region6: #{embedder_apply.1} parent=1 // loop_footer
      %s13 = sadd.s32 1, %s9
    $region7: #{embedder_apply.1} parent=1 // loop_footer_branch
      %8 = sbr.rel target = $region3
    $region8: #{embedder_apply.1} parent=1 // loop_exit
      _
    %263 = vsyncpa [#allocation3], 1
    %s264 = scalar_lea.sflag [#allocation3], 1
    %265 = vsyncpa %s264, 1

</llo_original>
